<compile_context>
chip_gen: v5e
topology: v5e:2x2
jax: 0.10.0
libtpu: 0.0.40
codegen_flags: <defaults>
</compile_context>

<pallas_src>
import numpy as np
import jax
import jax.numpy as jnp
from jax.experimental import pallas as pl
from jax.experimental.pallas import tpu as pltpu

LANE = 128


def _dice_partial_kernel(ix_ref, x_ref, t_ref, o_ref):
    # ix_ref (scalar-prefetch, SMEM) is consumed only by the index_maps.
    del ix_ref
    x = x_ref[...].astype(jnp.float32)            # [TP, LANE] logits tile for (class, batch)
    t = t_ref[...].astype(jnp.float32)            # [TP, LANE] target tile (reused across classes)
    s = 0.5 * jnp.tanh(0.5 * x) + 0.5             # == sigmoid(x); single EUP op per element
    # Direct row stores into the [2, LANE] lane-dense partial block (no concat temporary).
    o_ref[0:1, :] = 2.0 * jnp.sum(s * t, axis=0, keepdims=True)   # 2 * intersection (partial)
    o_ref[1:2, :] = jnp.sum(s + t, axis=0, keepdims=True)         # sum(s) + sum(t)   (partial)


def dice_loss(input_nchw, target, ix_weights, *, tile_rows=2048):
    """input_nchw: [B, C, H, W], target: [B, 1, H, W] (or [B, H, W]), ix_weights: int channel indices."""
    B, C, H, W = map(int, input_nchw.shape)

    # --- static channel-index handling: validate, then deduplicate (exact same math) -------
    ix_np = np.asarray(jax.device_get(ix_weights)).astype(np.int32).reshape(-1)
    Cp = int(ix_np.shape[0])                       # n_classes after the gather (PyTorch semantics)
    assert Cp > 0, "ix_weights must be non-empty"
    assert np.all((ix_np >= 0) & (ix_np < C)), "ix_weights index out of range for channel dim"
    uniq, cnts = np.unique(ix_np, return_counts=True)
    Cu = int(uniq.shape[0])                        # unique gathered channels actually computed
    ix_u = jnp.asarray(uniq, dtype=jnp.int32)
    counts_f = jnp.asarray(cnts, dtype=jnp.float32)

    # --- spatial tiling: big tiles, pad rows up to a TP multiple (never full-extent OOM) ----
    HW = H * W
    NP0 = -(-HW // LANE)                           # rows of 128 lanes needed
    cap = max(8, (int(tile_rows) // 8) * 8)        # 8-aligned sublane tile cap
    if NP0 <= cap:
        TP, TG = NP0, 1                            # full extent (small, always legal & tiny VMEM)
    else:
        TP = cap                                   # 8-aligned -> always a legal block
        TG = -(-NP0 // TP)
    padded_len = TG * TP * LANE

    x2 = input_nchw.reshape(B * C, HW)             # free reshape, no copy, no upcast
    t2 = target.reshape(B, HW)                     # squeeze(channel) + flatten, free
    pad = padded_len - HW
    if pad:
        x2 = jnp.pad(x2, ((0, 0), (0, pad)), constant_values=-40.0)   # sigmoid(-40) ~ 4e-18
        t2 = jnp.pad(t2, ((0, 0), (0, pad)))
    NP = TG * TP
    x3 = x2.reshape(B * C, NP, LANE)
    t3 = t2.reshape(B, NP, LANE)

    def x_index(p, b, c, ix_ref):                  # in-kernel channel gather via scalar prefetch
        return (b * C + ix_ref[c], p, 0)

    def t_index(p, b, c, ix_ref):                  # independent of c -> re-DMA skipped across classes
        return (b, p, 0)

    def o_index(p, b, c, ix_ref):                  # one distinct [2,128] partial block per grid step
        return ((p * B + b) * Cu + c, 0, 0)

    # Megacore: spatial & batch axes shard across TensorCores. If that product is degenerate
    # (single tile, single batch), promote the class axis to "parallel" so v7x still uses
    # both cores (the extra target re-fetch there is negligible).
    class_sem = "parallel" if (TG * B) < 2 else "arbitrary"

    partials = pl.pallas_call(
        _dice_partial_kernel,
        out_shape=jax.ShapeDtypeStruct((TG * B * Cu, 2, LANE), jnp.float32),
        grid_spec=pltpu.PrefetchScalarGridSpec(
            num_scalar_prefetch=1,
            grid=(TG, B, Cu),
            in_specs=[
                pl.BlockSpec((None, TP, LANE), x_index),
                pl.BlockSpec((None, TP, LANE), t_index),
            ],
            out_specs=pl.BlockSpec((None, 2, LANE), o_index),
        ),
        compiler_params=pltpu.CompilerParams(
            dimension_semantics=("parallel", "parallel", class_sem),
            vmem_limit_bytes=32 * 1024 * 1024,     # ample for 2 inputs x 2 buffers x (TP,128) f32
        ),
    )(ix_u, x3, t3)

    # Tiny epilogue in JAX: finish the reductions, per-class dice ratio, re-apply multiplicities.
    sums = partials.reshape(TG * B, Cu, 2, LANE).sum(axis=(0, 3))   # [Cu, 2]
    smooth = jnp.float32(1.0)
    dice_u = 1.0 - (sums[:, 0] + smooth) / (sums[:, 1] + smooth)    # per unique channel
    return jnp.sum(counts_f * dice_u) / jnp.float32(Cp * B)


def dice_loss_ref(input_nchw, target, ix_weights):
    """Pure-JAX reference mirroring the PyTorch module exactly."""
    x = jnp.take(input_nchw, ix_weights, axis=1)
    tgt = jnp.squeeze(target, axis=1).astype(jnp.float32)
    bs, n_classes = x.shape[:2]
    dlc = jnp.float32(0.0)
    for i in range(n_classes):
        s = jax.nn.sigmoid(x[:, i]).reshape(-1)
        t = tgt.reshape(-1)
        inter = jnp.sum(s * t)
        dlc = dlc + (1.0 - (2.0 * inter + 1.0) / (jnp.sum(s) + jnp.sum(t) + 1.0))
    return dlc / n_classes / bs


if __name__ == "__main__":
    key = jax.random.PRNGKey(0)
    B, C, H, W = 2, 4, 16, 16
    k1, k2 = jax.random.split(key)

    x = jax.random.normal(k1, (B, C, H, W), dtype=jnp.float32)
    target = (jax.random.uniform(k2, (B, 1, H, W)) > 0.5).astype(jnp.float32)

    # Deterministic stand-in for the module-level `code_weights` (synthetic, not a checkpoint).
    code_weights = np.array([0.5, 0.0, 1.2, -0.3], dtype=np.float32)
    ix_weights = jnp.asarray((code_weights > 0).astype(np.int32))   # 0/1 long-index tensor

    loss = dice_loss(x, target, ix_weights)
    jax.block_until_ready(loss)

    ref = dice_loss_ref(x, target, ix_weights)
    assert np.allclose(np.asarray(loss), np.asarray(ref), atol=1e-5, rtol=1e-5), (loss, ref)
    print("KERNEL_OK")
</pallas_src>

<mosaic_0001>
module attributes {stable_mosaic.version = 11 : i64} {
  func.func @_dice_partial_kernel(%arg0: i32, %arg1: i32, %arg2: i32, %arg3: memref<2xi32, #tpu.memory_space<smem>>, %arg4: memref<1x2x128xf32, #tpu.memory_space<vmem>>, %arg5: memref<1x2x128xf32, #tpu.memory_space<vmem>>, %arg6: memref<1x2x128xf32, #tpu.memory_space<vmem>>) attributes {dimension_semantics = [#tpu.dimension_semantics<parallel>, #tpu.dimension_semantics<parallel>, #tpu.dimension_semantics<arbitrary>], iteration_bounds = array<i64: 1, 2, 2>, scalar_prefetch = 1 : i64, scratch_operands = 0 : i64, tpu.core_type = #tpu.core_type<tc>, window_params = [{transform_indices = @transform_0, window_bounds = array<i64: 1, 2, 128>}, {transform_indices = @transform_1, window_bounds = array<i64: 1, 2, 128>}, {transform_indices = @transform_2, window_bounds = array<i64: 1, 2, 128>}]} {
    %c0 = arith.constant 0 : index
    %c0_0 = arith.constant 0 : index
    %c0_1 = arith.constant 0 : index
    %0 = vector.load %arg4[%c0, %c0_0, %c0_1] : memref<1x2x128xf32, #tpu.memory_space<vmem>>, vector<1x2x128xf32>
    %1 = vector.shape_cast %0 : vector<1x2x128xf32> to vector<2x128xf32>
    %c0_2 = arith.constant 0 : index
    %c0_3 = arith.constant 0 : index
    %c0_4 = arith.constant 0 : index
    %2 = vector.load %arg5[%c0_2, %c0_3, %c0_4] : memref<1x2x128xf32, #tpu.memory_space<vmem>>, vector<1x2x128xf32>
    %3 = vector.shape_cast %2 : vector<1x2x128xf32> to vector<2x128xf32>
    %cst = arith.constant 5.000000e-01 : f32
    %4 = vector.broadcast %cst : f32 to vector<2x128xf32>
    %5 = arith.mulf %4, %1 : vector<2x128xf32>
    %6 = math.tanh %5 : vector<2x128xf32>
    %cst_5 = arith.constant 5.000000e-01 : f32
    %7 = vector.broadcast %cst_5 : f32 to vector<2x128xf32>
    %8 = arith.mulf %7, %6 : vector<2x128xf32>
    %cst_6 = arith.constant 5.000000e-01 : f32
    %9 = vector.broadcast %cst_6 : f32 to vector<2x128xf32>
    %10 = arith.addf %8, %9 : vector<2x128xf32>
    %11 = arith.mulf %10, %3 : vector<2x128xf32>
    %cst_7 = arith.constant dense<0.000000e+00> : vector<128xf32>
    %12 = vector.multi_reduction <add>, %11, %cst_7 [0] : vector<2x128xf32> to vector<128xf32>
    %13 = vector.shape_cast %12 : vector<128xf32> to vector<1x128xf32>
    %cst_8 = arith.constant 2.000000e+00 : f32
    %14 = vector.broadcast %cst_8 : f32 to vector<1x128xf32>
    %15 = arith.mulf %14, %13 : vector<1x128xf32>
    %c0_9 = arith.constant 0 : index
    %c0_10 = arith.constant 0 : index
    %c0_11 = arith.constant 0 : index
    %16 = vector.load %arg6[%c0_9, %c0_10, %c0_11] : memref<1x2x128xf32, #tpu.memory_space<vmem>>, vector<1x1x128xf32>
    %17 = vector.shape_cast %16 : vector<1x1x128xf32> to vector<1x128xf32>
    %18 = vector.shape_cast %15 : vector<1x128xf32> to vector<1x1x128xf32>
    tpu.vector_store %arg6[%c0_9, %c0_10, %c0_11], %18 {strides = array<i32>} : memref<1x2x128xf32, #tpu.memory_space<vmem>>, vector<1x1x128xf32>,
    %19 = arith.addf %10, %3 : vector<2x128xf32>
    %cst_12 = arith.constant dense<0.000000e+00> : vector<128xf32>
    %20 = vector.multi_reduction <add>, %19, %cst_12 [0] : vector<2x128xf32> to vector<128xf32>
    %21 = vector.shape_cast %20 : vector<128xf32> to vector<1x128xf32>
    %c0_13 = arith.constant 0 : index
    %c1 = arith.constant 1 : index
    %c0_14 = arith.constant 0 : index
    %22 = vector.load %arg6[%c0_13, %c1, %c0_14] : memref<1x2x128xf32, #tpu.memory_space<vmem>>, vector<1x1x128xf32>
    %23 = vector.shape_cast %22 : vector<1x1x128xf32> to vector<1x128xf32>
    %24 = vector.shape_cast %21 : vector<1x128xf32> to vector<1x1x128xf32>
    tpu.vector_store %arg6[%c0_13, %c1, %c0_14], %24 {strides = array<i32>} : memref<1x2x128xf32, #tpu.memory_space<vmem>>, vector<1x1x128xf32>,
    return
  }
  func.func @transform_0(%arg0: i32, %arg1: i32, %arg2: i32, %arg3: memref<2xi32, #tpu.memory_space<smem>>) -> (i32, i32, i32) {
    %c4_i32 = arith.constant 4 : i32
    %0 = arith.muli %arg1, %c4_i32 : i32
    %1 = arith.index_cast %arg2 : i32 to index
    %2 = memref.load %arg3[%1] : memref<2xi32, #tpu.memory_space<smem>>
    %3 = arith.addi %0, %2 : i32
    %c0_i32 = arith.constant 0 : i32
    %c0_i32_0 = arith.constant 0 : i32
    return %3, %arg0, %c0_i32 : i32, i32, i32
  }
  func.func @transform_1(%arg0: i32, %arg1: i32, %arg2: i32, %arg3: memref<2xi32, #tpu.memory_space<smem>>) -> (i32, i32, i32) {
    %c0_i32 = arith.constant 0 : i32
    %c0_i32_0 = arith.constant 0 : i32
    return %arg1, %arg0, %c0_i32 : i32, i32, i32
  }
  func.func @transform_2(%arg0: i32, %arg1: i32, %arg2: i32, %arg3: memref<2xi32, #tpu.memory_space<smem>>) -> (i32, i32, i32) {
    %c2_i32 = arith.constant 2 : i32
    %0 = arith.muli %arg0, %c2_i32 : i32
    %1 = arith.addi %0, %arg1 : i32
    %c2_i32_0 = arith.constant 2 : i32
    %2 = arith.muli %1, %c2_i32_0 : i32
    %3 = arith.addi %2, %arg2 : i32
    %c0_i32 = arith.constant 0 : i32
    %c0_i32_1 = arith.constant 0 : i32
    %c0_i32_2 = arith.constant 0 : i32
    return %3, %c0_i32, %c0_i32_1 : i32, i32, i32
  }
}

</mosaic_0001>

<llo_original>
// kernel: tpu_custom_call.1
$region0: #{tpu_custom_call.1}
  #allocation0 [shape = 'u32[]', space=smem, size = 0x4, offset = 0x4, fixed_abs, tag = 'smem constant byte address 0x4 - core index']
  #allocation1 [shape = 'u32[72,128]{1,0:T(1,128)}', space=vmem, size = 0x9000, scoped, tag = 'internal scratch']
  #allocation2 [shape = 's32[1]{0}', space=sflag, size = 0x4, scoped, tag = 'scoped memory for tpu_custom_call.1']
  #allocation3 [shape = 'u8[512]{0}', space=smem, size = 0x200, scoped, tag = 'prefetched SMEM operand 0']
  %s0 = inlined_call_operand.hbm [shape: s32[2], index: 0, kind: input, shape index: {}]
  %s1 = inlined_call_operand.hbm [shape: f32[8,2,128], index: 1, kind: input, shape index: {}]
  %s2 = inlined_call_operand.hbm [shape: f32[2,2,128], index: 2, kind: input, shape index: {}]
  %s3 = inlined_call_operand.hbm [shape: f32[4,2,128], index: 3, kind: output, shape index: {}]
  %s4 = sld [smem:[#allocation0]]
  $region49: #{tpu_custom_call.1} parent=0
    _
  %s6 = ssub.s32 1, %s4
  %s7 = scalar_select 0, %s6, %s4
  %s9 = sshll.u32 %s0, 4
  %s10 = int_to_ptr.hbm [resolvable:$true] %s9
  %12 = dma.hbm_to_smem %s10, 16, [#allocation3], [#allocation2]
  %14 = dma.done [#allocation2], 16
  %15 = sfence
  $region1: #{tpu_custom_call.1} parent=0
    #allocation4 [shape = 'u8[2048]{0}', space=vmem, size = 0x800, scoped, tag = 'input window, operand 1']
    #allocation5 [shape = 's32[2]{0}', space=sflag, size = 0x8, scoped, tag = 'scoped memory for tpu_custom_call.1']
    #allocation6 [shape = 's32[2]{0}', space=sflag, size = 0x8, scoped, tag = 'scoped memory for tpu_custom_call.1']
    #allocation7 [shape = 'u8[2048]{0}', space=vmem, size = 0x800, scoped, tag = 'input window, operand 2']
    #allocation8 [shape = 's32[2]{0}', space=sflag, size = 0x8, scoped, tag = 'scoped memory for tpu_custom_call.1']
    #allocation9 [shape = 'u8[2048]{0}', space=vmem, size = 0x800, scoped, tag = 'output window, operand 0']
    %16 = vsyncpa [#allocation5], 0
    %s17 = scalar_lea.sflag [#allocation5], 1
    %18 = vsyncpa %s17, 0
    %19 = vsyncpa [#allocation8], 0
    %s20 = scalar_lea.sflag [#allocation8], 1
    %21 = vsyncpa %s20, 0
    %22 = vsyncpa [#allocation6], 0
    %s23 = scalar_lea.sflag [#allocation6], 1
    %24 = vsyncpa %s23, 0
    loop: start=0, step=1, limit=6
    $region2: #{tpu_custom_call.1} parent=1 // loop_pre_header
      _
    $region3: #{tpu_custom_call.1} parent=1 // loop_header
      %s26 = sphi 0, %s30
      %p27 = scmp.ge.s32.totalorder %s26, 6
      %s33 = sphi 0, %s52
      %s34 = sphi 0, %s48
      %s35 = sphi 0, %s44
      %s36 = sphi 0, %s33
      %s37 = sphi 0, %s34
      %s38 = sphi 0, %s35
      %s39 = sphi 0, %s36
      %s40 = sphi 0, %s37
      %s41 = sphi 0, %s38
      %s63 = sphi 0, %s65
      %s66 = sphi 0, %s63
      %s67 = sphi 0, %s66
      %s83 = sphi 0, %s67
      %s91 = sphi 0, %s93
      %s94 = sphi 0, %s91
      %s95 = sphi 0, %s94
      %s111 = sphi 0, %s95
      %s125 = sphi 0, %s127
      %s128 = sphi 0, %s125
      %s129 = sphi 0, %s128
      %s145 = sphi 0, %s129
    $region4: #{tpu_custom_call.1} parent=1 // loop_header_branch
      %29 = sbr.rel (%p27) target = $region8
    $region5: #{tpu_custom_call.1} parent=1 // loop_body
      %s31 = ssub.s32 %s26, 1
      %s32 = ssub.s32 %s26, 2
      %s42 = sadd.s32 1, %s35
      %p43 = scmp.ge.s32.totalorder %s42, 2
      %s44 = scalar_select %p43, 0, %s42
      %s45 = sadd.s32 1, %s34
      %s46 = scalar_select %p43, %s45, %s34
      %p47 = scmp.ge.s32.totalorder %s46, 2
      %s48 = scalar_select %p47, 0, %s46
      %s49 = sadd.s32 1, %s33
      %s50 = scalar_select %p47, %s49, %s33
      %p51 = scmp.ge.s32.totalorder %s50, 1
      %s52 = scalar_select %p51, 0, %s50
      %s53 = smul.u32 %s34, 4
      %s54 = sld [smem:[#allocation3 + %s35]]
      %s55 = sadd.s32 %s53, %s54
      %s56 = smul.u32 %s48, 4
      %s57 = sld [smem:[#allocation3 + %s44]]
      %s58 = sadd.s32 %s56, %s57
      %s59 = ssub.s32 %s55, %s58
      %s60 = ssub.s32 %s33, %s52
      %s61 = sor.u32 %s59, %s60
      %p62 = scmp.eq.s32.totalorder %s61, 0
      %s64 = sadd.s32 %s63, 1
      %s65 = scalar_select %p62, %s63, %s64
      %p68 = pneg %p62
      %p69 = scmp.eq.s32.totalorder %s26, 3
      %p70 = por %p68, %p69
      %p71 = scmp.ne.s32.totalorder %s63, %s66
      %p72 = scmp.eq.s32.totalorder %s26, 0
      %p73 = por %p71, %p72
      %p74 = scmp.ne.s32.totalorder %s63, %s66
      %p75 = scmp.eq.s32.totalorder %s31, 3
      %p76 = por %p74, %p75
      %p77 = scmp.ne.s32.totalorder %s66, %s67
      %p78 = scmp.eq.s32.totalorder %s31, 0
      %p79 = por %p77, %p78
      %p80 = scmp.ne.s32.totalorder %s66, %s67
      %p81 = scmp.eq.s32.totalorder %s32, 3
      %p82 = por %p80, %p81
      %p84 = scmp.ne.s32.totalorder %s67, %s83
      %p85 = scmp.eq.s32.totalorder %s32, 0
      %p86 = por %p84, %p85
      %s87 = ssub.s32 %s34, %s48
      %s88 = ssub.s32 %s33, %s52
      %s89 = sor.u32 %s87, %s88
      %p90 = scmp.eq.s32.totalorder %s89, 0
      %s92 = sadd.s32 %s91, 1
      %s93 = scalar_select %p90, %s91, %s92
      %p96 = pneg %p90
      %p97 = scmp.eq.s32.totalorder %s26, 3
      %p98 = por %p96, %p97
      %p99 = scmp.ne.s32.totalorder %s91, %s94
      %p100 = scmp.eq.s32.totalorder %s26, 0
      %p101 = por %p99, %p100
      %p102 = scmp.ne.s32.totalorder %s91, %s94
      %p103 = scmp.eq.s32.totalorder %s31, 3
      %p104 = por %p102, %p103
      %p105 = scmp.ne.s32.totalorder %s94, %s95
      %p106 = scmp.eq.s32.totalorder %s31, 0
      %p107 = por %p105, %p106
      %p108 = scmp.ne.s32.totalorder %s94, %s95
      %p109 = scmp.eq.s32.totalorder %s32, 3
      %p110 = por %p108, %p109
      %p112 = scmp.ne.s32.totalorder %s95, %s111
      %p113 = scmp.eq.s32.totalorder %s32, 0
      %p114 = por %p112, %p113
      %s115 = smul.u32 %s33, 2
      %s116 = sadd.s32 %s115, %s34
      %s117 = smul.u32 %s116, 2
      %s118 = sadd.s32 %s117, %s35
      %s119 = smul.u32 %s52, 2
      %s120 = sadd.s32 %s119, %s48
      %s121 = smul.u32 %s120, 2
      %s122 = sadd.s32 %s121, %s44
      %s123 = ssub.s32 %s118, %s122
      %p124 = scmp.eq.s32.totalorder %s123, 0
      %s126 = sadd.s32 %s125, 1
      %s127 = scalar_select %p124, %s125, %s126
      %p130 = pneg %p124
      %p131 = scmp.eq.s32.totalorder %s26, 3
      %p132 = por %p130, %p131
      %p133 = scmp.ne.s32.totalorder %s125, %s128
      %p134 = scmp.eq.s32.totalorder %s26, 0
      %p135 = por %p133, %p134
      %p136 = scmp.ne.s32.totalorder %s125, %s128
      %p137 = scmp.eq.s32.totalorder %s31, 3
      %p138 = por %p136, %p137
      %p139 = scmp.ne.s32.totalorder %s128, %s129
      %p140 = scmp.eq.s32.totalorder %s31, 0
      %p141 = por %p139, %p140
      %p142 = scmp.ne.s32.totalorder %s128, %s129
      %p143 = scmp.eq.s32.totalorder %s32, 3
      %p144 = por %p142, %p143
      %p146 = scmp.ne.s32.totalorder %s129, %s145
      %p147 = scmp.eq.s32.totalorder %s32, 0
      %p148 = por %p146, %p147
      %p149 = scmp.le.s32.totalorder 1, %s26
      %p150 = scmp.lt.s32.totalorder %s26, 5
      %p151 = pnand %p149, %p150
      %p152 = pneg %p151
      // Predicated region
      $region9: #{tpu_custom_call.1} parent=5 // pred_check
        _
      $region10: #{tpu_custom_call.1} parent=5 // pred_check_branch
        %154 = sbr.rel (%p151) target = $region12
      $region11: #{tpu_custom_call.1} parent=5 // pred_region
        %s155 = ssub.s32 %s26, 1
      $region12: #{tpu_custom_call.1} parent=5 // pred_fallthru
        _
      %p156 = scmp.lt.s32.totalorder %s26, 4
      // Predicated region
      $region13: #{tpu_custom_call.1} parent=5 // pred_check
        %p157 = pneg %p156
      $region14: #{tpu_custom_call.1} parent=5 // pred_check_branch
        %159 = sbr.rel (%p157) target = $region16
      $region15: #{tpu_custom_call.1} parent=5 // pred_region
        // Predicated region
        $region17: #{tpu_custom_call.1} parent=15 // pred_check
          %p160 = pneg %p73
        $region18: #{tpu_custom_call.1} parent=15 // pred_check_branch
          %162 = sbr.rel (%p160) target = $region20
        $region19: #{tpu_custom_call.1} parent=15 // pred_region
          %s163 = sand.u32 %s63, 1
          %s164 = scalar_lea.sflag [#allocation5], %s163
          %s165 = sand.u32 %s63, 1
          %s166 = smul.addr %s165, 2
          %s167 = scalar_lea.vmem [#allocation4], %s166
          %s168 = smul.u32 %s34, 4
          %s169 = sld [smem:[#allocation3 + %s35]]
          %s170 = sadd.s32 %s168, %s169
          %172 = vsyncadd %s164, 0
          %s173 = sadd.s32 %s33, %s170
          %s174 = smul.addr %s173, 2
          %s175 = scalar_lea.hbm %s1, %s174
          %s177 = sshll.u32 %s175, 4
          %s178 = int_to_ptr.hbm [resolvable:$true] %s177
          %s179 = sshll.u32 %s167, 4
          %s180 = int_to_ptr.vmem [resolvable:$true] %s179
          %182 = dma.hbm_to_vmem [thread:$0]  %s178, 32, %s180, %s164
        $region20: #{tpu_custom_call.1} parent=15 // pred_fallthru
          _
        // Predicated region
        $region21: #{tpu_custom_call.1} parent=15 // pred_check
          %p183 = pneg %p101
        $region22: #{tpu_custom_call.1} parent=15 // pred_check_branch
          %185 = sbr.rel (%p183) target = $region24
        $region23: #{tpu_custom_call.1} parent=15 // pred_region
          %s186 = sand.u32 %s91, 1
          %s187 = scalar_lea.sflag [#allocation8], %s186
          %s188 = sand.u32 %s91, 1
          %s189 = smul.addr %s188, 2
          %s190 = scalar_lea.vmem [#allocation7], %s189
          %192 = vsyncadd %s187, 0
          %s193 = sadd.s32 %s33, %s34
          %s194 = smul.addr %s193, 2
          %s195 = scalar_lea.hbm %s2, %s194
          %s197 = sshll.u32 %s195, 4
          %s198 = int_to_ptr.hbm [resolvable:$true] %s197
          %s199 = sshll.u32 %s190, 4
          %s200 = int_to_ptr.vmem [resolvable:$true] %s199
          %202 = dma.hbm_to_vmem [thread:$0]  %s198, 32, %s200, %s187
        $region24: #{tpu_custom_call.1} parent=15 // pred_fallthru
          _
      $region16: #{tpu_custom_call.1} parent=5 // pred_fallthru
        _
      %p203 = scmp.le.s32.totalorder 1, %s26
      %p204 = scmp.lt.s32.totalorder %s26, 5
      %p205 = pnand %p203, %p204
      %p206 = pneg %p205
      // Predicated region
      $region25: #{tpu_custom_call.1} parent=5 // pred_check
        _
      $region26: #{tpu_custom_call.1} parent=5 // pred_check_branch
        %208 = sbr.rel (%p205) target = $region28
      $region27: #{tpu_custom_call.1} parent=5 // pred_region
        %s209 = ssub.s32 %s26, 1
        %s210 = sand.u32 %s66, 1
        %s211 = scalar_lea.sflag [#allocation5], %s210
        %s212 = sand.u32 %s66, 1
        %s213 = smul.addr %s212, 2
        %s214 = scalar_lea.vmem [#allocation4], %s213
        // Predicated region
        $region29: #{tpu_custom_call.1} parent=27 // pred_check
          %p215 = pneg %p79
        $region30: #{tpu_custom_call.1} parent=27 // pred_check_branch
          %217 = sbr.rel (%p215) target = $region32
        $region31: #{tpu_custom_call.1} parent=27 // pred_region
          %219 = dma.done %s211, 32
        $region32: #{tpu_custom_call.1} parent=27 // pred_fallthru
          _
        %s220 = sand.u32 %s94, 1
        %s221 = scalar_lea.sflag [#allocation8], %s220
        %s222 = sand.u32 %s94, 1
        %s223 = smul.addr %s222, 2
        %s224 = scalar_lea.vmem [#allocation7], %s223
        // Predicated region
        $region33: #{tpu_custom_call.1} parent=27 // pred_check
          %p225 = pneg %p107
        $region34: #{tpu_custom_call.1} parent=27 // pred_check_branch
          %227 = sbr.rel (%p225) target = $region36
        $region35: #{tpu_custom_call.1} parent=27 // pred_region
          %229 = dma.done %s221, 32
        $region36: #{tpu_custom_call.1} parent=27 // pred_fallthru
          _
        %s230 = sand.u32 %s66, 1
        %s231 = scalar_lea.sflag [#allocation5], %s230
        %s232 = sand.u32 %s66, 1
        %s233 = smul.addr %s232, 2
        %s234 = scalar_lea.vmem [#allocation4], %s233
        %p235 = pneg %p79
        %p236 = pneg %p76
        %s237 = sand.u32 %s94, 1
        %s238 = scalar_lea.sflag [#allocation8], %s237
        %s239 = sand.u32 %s94, 1
        %s240 = smul.addr %s239, 2
        %s241 = scalar_lea.vmem [#allocation7], %s240
        %p242 = pneg %p107
        %p243 = pneg %p104
        %p244 = pneg %p141
        %p245 = pneg %p138
        %s246 = sand.u32 %s128, 1
        %s247 = scalar_lea.sflag [#allocation6], %s246
        %s248 = sand.u32 %s128, 1
        %s249 = smul.addr %s248, 2
        %s250 = scalar_lea.vmem [#allocation9], %s249
        %s251 = smul.u32 %s37, 4
        %s252 = sld [smem:[#allocation3 + %s38]]
        %s253 = sadd.s32 %s251, %s252
        %s254 = smul.u32 %s36, 2
        %s255 = sadd.s32 %s254, %s37
        %s256 = smul.u32 %s255, 2
        %s257 = sadd.s32 %s256, %s38
        %v258 = vld [vmem:[%s214] sm:$0x3]
        %v259 = vld [vmem:[%s224] sm:$0x3]
        %v260 = vmul.f32 %v258, 0.5
        %v261 = vtanh.pop %v260
        %v262 = vmul.f32 %v261, 0.5
        %v263 = vadd.f32 %v262, 0.5
        %v264 = vmul.f32 %v263, %v259
        %vm265 = vcmask 1041408
        %v266 = vsel %vm265, %v264, 0.0
        %v267 = vrot.slane %v266, 4
        %v268 = vadd.f32 %v266, %v267
        %v269 = vrot.slane %v268, 2
        %v270 = vadd.f32 %v268, %v269
        %v271 = vrot.slane %v270, 1
        %v272 = vadd.f32 %v270, %v271
        %v273 = vmul.f32 %v272, 2.0
        %274 = vst [vmem:[%s250] sm:$0x1] %v273
        %v275 = vadd.f32 %v263, %v259
        %v276 = vsel %vm265, %v275, 0.0
        %v277 = vrot.slane %v276, 4
        %v278 = vadd.f32 %v276, %v277
        %v279 = vrot.slane %v278, 2
        %v280 = vadd.f32 %v278, %v279
        %v281 = vrot.slane %v280, 1
        %v282 = vadd.f32 %v280, %v281
        %283 = vst [vmem:[%s250 + $0x1] sm:$0x1] %v282
        %s284 = sand.u32 %s128, 1
        %s285 = scalar_lea.sflag [#allocation6], %s284
        %s286 = sand.u32 %s128, 1
        %s287 = smul.addr %s286, 2
        %s288 = scalar_lea.vmem [#allocation9], %s287
        // Predicated region
        $region37: #{tpu_custom_call.1} parent=27 // pred_check
          %p289 = pneg %p138
        $region38: #{tpu_custom_call.1} parent=27 // pred_check_branch
          %291 = sbr.rel (%p289) target = $region40
        $region39: #{tpu_custom_call.1} parent=27 // pred_region
          %s292 = smul.u32 %s36, 2
          %s293 = sadd.s32 %s292, %s37
          %s294 = smul.u32 %s293, 2
          %s295 = sadd.s32 %s294, %s38
          %297 = vsyncadd %s285, 0
          %s298 = smul.addr %s295, 2
          %s299 = scalar_lea.hbm %s3, %s298
          %s301 = sshll.u32 %s288, 4
          %s302 = int_to_ptr.vmem [resolvable:$true] %s301
          %s303 = sshll.u32 %s299, 4
          %s304 = int_to_ptr.hbm [resolvable:$true] %s303
          %306 = dma.vmem_to_hbm [thread:$0]  %s302, 32, %s304, %s285
        $region40: #{tpu_custom_call.1} parent=27 // pred_fallthru
          _
      $region28: #{tpu_custom_call.1} parent=5 // pred_fallthru
        _
      %p307 = scmp.le.s32.totalorder 2, %s26
      // Predicated region
      $region41: #{tpu_custom_call.1} parent=5 // pred_check
        %p308 = pneg %p307
      $region42: #{tpu_custom_call.1} parent=5 // pred_check_branch
        %310 = sbr.rel (%p308) target = $region44
      $region43: #{tpu_custom_call.1} parent=5 // pred_region
        %s311 = ssub.s32 %s26, 2
        // Predicated region
        $region45: #{tpu_custom_call.1} parent=43 // pred_check
          %p312 = pneg %p144
        $region46: #{tpu_custom_call.1} parent=43 // pred_check_branch
          %314 = sbr.rel (%p312) target = $region48
        $region47: #{tpu_custom_call.1} parent=43 // pred_region
          %s315 = sand.u32 %s129, 1
          %s316 = scalar_lea.sflag [#allocation6], %s315
          %s317 = sand.u32 %s129, 1
          %s318 = smul.addr %s317, 2
          %s319 = scalar_lea.vmem [#allocation9], %s318
          %321 = dma.done %s316, 32
        $region48: #{tpu_custom_call.1} parent=43 // pred_fallthru
          _
      $region44: #{tpu_custom_call.1} parent=5 // pred_fallthru
        _
    $region6: #{tpu_custom_call.1} parent=1 // loop_footer
      %s30 = sadd.s32 1, %s26
    $region7: #{tpu_custom_call.1} parent=1 // loop_footer_branch
      %25 = sbr.rel target = $region3
    $region8: #{tpu_custom_call.1} parent=1 // loop_exit
      _
    %322 = vsyncpa [#allocation5], 1
    %s323 = scalar_lea.sflag [#allocation5], 1
    %324 = vsyncpa %s323, 1
    %325 = vsyncpa [#allocation8], 1
    %s326 = scalar_lea.sflag [#allocation8], 1
    %327 = vsyncpa %s326, 1
    %328 = vsyncpa [#allocation6], 1
    %s329 = scalar_lea.sflag [#allocation6], 1
    %330 = vsyncpa %s329, 1

</llo_original>
